<compile_context>
chip_gen: v7x
topology: tpu7x:2x2x1
jax: 0.10.0
libtpu: 0.0.40
codegen_flags: <defaults>
</compile_context>

<pallas_src>
import numpy as np
import jax
import jax.numpy as jnp
from jax.experimental import pallas as pl
from jax.experimental.pallas import tpu as pltpu


def _round_up(x, m):
    return ((x + m - 1) // m) * m


def _make_kernel(num_layers, num_graphs_padded, num_outputs, num_atom_types,
                 has_atom_refs):
    """Build the Pallas kernel body (closure over static config)."""

    def kernel(*refs):
        x_ref = refs[0]          # [TILE_N, F] f32
        atoms_ref = refs[1]      # [1, TILE_N] int32
        gidx_ref = refs[2]       # [1, TILE_N] int32
        w_refs = refs[3:3 + 2 * num_layers]
        aref_ref = refs[3 + 2 * num_layers] if has_atom_refs else None
        out_ref = refs[-1]       # [O, G_pad] f32 (resident accumulator block)

        @pl.when(pl.program_id(0) == 0)
        def _():
            out_ref[...] = jnp.zeros_like(out_ref)

        # ---- readout MLP, feature-major: h is [d, TILE_N] (nodes on lanes) ----
        x = x_ref[...]
        h = None
        for layer in range(num_layers):
            wT = w_refs[2 * layer][...]        # [dout, din]
            b = w_refs[2 * layer + 1][...]     # [dout, 1]
            if layer == 0:
                # (x @ W)^T == W^T @ x^T, via contraction of the F axes of both.
                h = jax.lax.dot_general(
                    wT, x, (((1,), (1,)), ((), ())),
                    preferred_element_type=jnp.float32) + b
            else:
                h = jnp.dot(wT, h, preferred_element_type=jnp.float32) + b
            if layer < num_layers - 1:
                h = h * jax.nn.sigmoid(h)      # SiLU
            # dropout_rate == 0.0 (eval mode) -> identity
        # mean/std scale-shift already folded into the last layer's weights/bias.

        # ---- atomic reference energies: VPU select-chain over atom types ----
        if has_atom_refs:
            atoms = atoms_ref[...]             # [1, TILE_N]
            aref = jnp.zeros(atoms.shape, jnp.float32)
            for t in range(num_atom_types):
                aref = jnp.where(atoms == t, aref_ref[t], aref)
            h = h + aref                       # broadcasts over outputs

        # ---- num_outputs == 2 special case: square the second output ----
        if num_outputs == 2:
            row = jax.lax.broadcasted_iota(jnp.int32, h.shape, 0)
            h = jnp.where(row == 1, h * h, h)

        # ---- per-graph segment sum (index_add_): out[O, G_pad] += h @ onehot^T ----
        gidx = gidx_ref[...]                                    # [1, TILE_N]
        g_iota = jax.lax.broadcasted_iota(
            jnp.int32, (num_graphs_padded, gidx.shape[1]), 0)
        seg = (g_iota == gidx).astype(jnp.float32)              # [G_pad, TILE_N]
        out_ref[...] += jax.lax.dot_general(
            h, seg, (((1,), (1,)), ((), ())),
            preferred_element_type=jnp.float32)                 # [O, G_pad]

    return kernel


def atomwise_prediction_pallas(scalar_features, atoms, graph_indexes, params,
                               *, num_outputs, num_layers, mean, std,
                               atom_refs, num_graphs, tile_n=512):
    """Wrapper: pads/tiles the node axis and calls the Pallas kernel."""
    num_nodes, num_features = scalar_features.shape
    has_atom_refs = atom_refs is not None
    num_atom_types = atom_refs.shape[0] if has_atom_refs else 0

    # Fold the static mean/std scale-shift into the last linear layer.
    folded = list(params)
    w_last, b_last = folded[-1]
    folded[-1] = (w_last * jnp.float32(std),
                  b_last * jnp.float32(std) + jnp.float32(mean))

    # Pad the node axis to a multiple of the tile; padded nodes get graph index
    # == num_graphs so they contribute to no real graph row.
    n_pad = int(pl.cdiv(num_nodes, tile_n)) * tile_n
    pad = n_pad - num_nodes
    x = jnp.pad(scalar_features.astype(jnp.float32), ((0, pad), (0, 0)))
    atoms_row = jnp.pad(atoms.astype(jnp.int32).reshape(1, num_nodes),
                        ((0, 0), (0, pad)))
    gidx_row = jnp.pad(graph_indexes.astype(jnp.int32).reshape(1, num_nodes),
                       ((0, 0), (0, pad)), constant_values=num_graphs)

    # Pad the graph (lane) axis of the resident accumulator to a multiple of 128
    # so per-tile accumulation uses unmasked, lane-dense vector stores.
    g_pad = _round_up(max(num_graphs, 1), 128)

    inputs = [x, atoms_row, gidx_row]
    in_specs = [
        pl.BlockSpec((tile_n, num_features), lambda i: (i, 0)),
        pl.BlockSpec((1, tile_n), lambda i: (0, i)),
        pl.BlockSpec((1, tile_n), lambda i: (0, i)),
    ]
    # Small weights/biases: constant index_map -> DMA'd once, resident across tiles.
    for (w, b) in folded:
        wT = jnp.asarray(w, jnp.float32).T                   # [dout, din]
        b_col = jnp.asarray(b, jnp.float32).reshape(-1, 1)   # [dout, 1]
        inputs += [wT, b_col]
        in_specs += [pl.BlockSpec(wT.shape, lambda i: (0, 0)),
                     pl.BlockSpec(b_col.shape, lambda i: (0, 0))]
    if has_atom_refs:
        inputs.append(atom_refs.astype(jnp.float32).reshape(-1))   # [T] scalars
        in_specs.append(pl.BlockSpec(memory_space=pltpu.MemorySpace.SMEM))

    kernel = _make_kernel(num_layers, g_pad, num_outputs,
                          num_atom_types, has_atom_refs)

    out_t = pl.pallas_call(
        kernel,
        out_shape=jax.ShapeDtypeStruct((num_outputs, g_pad), jnp.float32),
        grid=(n_pad // tile_n,),
        in_specs=in_specs,
        out_specs=pl.BlockSpec((num_outputs, g_pad), lambda i: (0, 0)),
        compiler_params=pltpu.CompilerParams(
            dimension_semantics=("arbitrary",)),
        # TODO(synk): on v7x, add a leading "parallel" grid axis splitting node
        # tiles across the two TensorCores with per-core partial accumulators.
    )(*inputs)
    return out_t[:, :num_graphs].T   # [num_graphs, num_outputs]


def build_readout_params(key, num_in_features, num_out_features, num_layers):
    """Deterministic init of the readout MLP (SchNetPack-style halving widths)."""
    widths = [num_in_features]
    c = num_in_features
    for _ in range(num_layers - 1):
        c = max(num_out_features, c // 2)
        widths.append(c)
    widths.append(num_out_features)

    params = []
    for l in range(num_layers):
        din, dout = widths[l], widths[l + 1]
        key, kw, kb = jax.random.split(key, 3)
        bound = 1.0 / np.sqrt(din)
        w = jax.random.uniform(kw, (din, dout), jnp.float32, -bound, bound)
        b = jax.random.uniform(kb, (dout,), jnp.float32, -bound, bound)
        params.append((w, b))
    return params


def reference_forward(scalar_features, atoms, graph_indexes, params,
                      *, num_outputs, mean, std, atom_refs, num_graphs):
    """Plain-JAX reference mirroring the PyTorch forward."""
    h = scalar_features.astype(jnp.float32)
    for l, (w, b) in enumerate(params):
        h = jnp.dot(h, w, precision=jax.lax.Precision.HIGHEST) + b
        if l < len(params) - 1:
            h = h * jax.nn.sigmoid(h)
    y = h * std + mean
    if atom_refs is not None:
        y = y + atom_refs[atoms]
    if num_outputs == 2:
        y = jnp.stack((y[:, 0], y[:, 1] ** 2), axis=1)
    out = jnp.zeros((num_graphs, num_outputs), jnp.float32)
    return out.at[graph_indexes].add(y)


if __name__ == "__main__":
    key = jax.random.PRNGKey(0)

    def run_case(k, *, num_nodes, num_features, num_outputs, num_layers,
                 num_atom_types, mean, std, use_atom_refs, graph_sizes, tile_n):
        k1, k2, k3, k4 = jax.random.split(k, 4)
        scalar_features = jax.random.normal(
            k1, (num_nodes, num_features), jnp.float32)
        atoms = jax.random.randint(k2, (num_nodes,), 0, num_atom_types, jnp.int32)
        graph_indexes = jnp.asarray(
            np.repeat(np.arange(len(graph_sizes), dtype=np.int32), graph_sizes))
        assert graph_indexes.shape[0] == num_nodes
        atom_refs = (jax.random.normal(k3, (num_atom_types, 1), jnp.float32)
                     if use_atom_refs else None)
        params = build_readout_params(k4, num_features, num_outputs, num_layers)

        # torch.unique(graph_indexes).shape[0]; computed statically host-side
        # (dynamic output shapes are not expressible in JAX/Pallas).
        num_graphs = int(np.unique(np.asarray(graph_indexes)).shape[0])

        out = atomwise_prediction_pallas(
            scalar_features, atoms, graph_indexes, params,
            num_outputs=num_outputs, num_layers=num_layers,
            mean=mean, std=std, atom_refs=atom_refs,
            num_graphs=num_graphs, tile_n=tile_n)
        out = jax.block_until_ready(out)

        ref = reference_forward(
            scalar_features, atoms, graph_indexes, params,
            num_outputs=num_outputs, mean=mean, std=std,
            atom_refs=atom_refs, num_graphs=num_graphs)

        assert out.shape == (num_graphs, num_outputs)
        np.testing.assert_allclose(np.asarray(out), np.asarray(ref),
                                   rtol=1e-3, atol=1e-3)

    k_a, k_b = jax.random.split(key)
    # Case 1: default PaiNN config (128 features, 2 layers, atom_refs);
    # 300 nodes -> 3 node tiles of 128 (exercises padding + accumulation).
    run_case(k_a, num_nodes=300, num_features=128, num_outputs=1, num_layers=2,
             num_atom_types=10, mean=0.5, std=2.0, use_atom_refs=True,
             graph_sizes=[80, 70, 90, 60], tile_n=128)
    # Case 2: num_outputs == 2 (second column squared), no atom_refs, 3 layers.
    run_case(k_b, num_nodes=200, num_features=64, num_outputs=2, num_layers=3,
             num_atom_types=5, mean=-0.3, std=1.5, use_atom_refs=False,
             graph_sizes=[70, 60, 70], tile_n=128)

    print("KERNEL_OK")
</pallas_src>

<mosaic_0001>
module attributes {stable_mosaic.version = 11 : i64} {
  func.func @kernel(%arg0: i32, %arg1: memref<128x128xf32, #tpu.memory_space<vmem>>, %arg2: memref<1x128xi32, #tpu.memory_space<vmem>>, %arg3: memref<1x128xi32, #tpu.memory_space<vmem>>, %arg4: memref<64x128xf32, #tpu.memory_space<vmem>>, %arg5: memref<64x1xf32, #tpu.memory_space<vmem>>, %arg6: memref<1x64xf32, #tpu.memory_space<vmem>>, %arg7: memref<1x1xf32, #tpu.memory_space<vmem>>, %arg8: memref<10xf32, #tpu.memory_space<smem>>, %arg9: memref<1x128xf32, #tpu.memory_space<vmem>>) attributes {dimension_semantics = [#tpu.dimension_semantics<arbitrary>], iteration_bounds = array<i64: 3>, scalar_prefetch = 0 : i64, scratch_operands = 0 : i64, tpu.core_type = #tpu.core_type<tc>, window_params = [{transform_indices = @transform_0, window_bounds = array<i64: 128, 128>}, {transform_indices = @transform_1, window_bounds = array<i64: 1, 128>}, {transform_indices = @transform_2, window_bounds = array<i64: 1, 128>}, {pipeline_mode = #tpu.pipeline_mode<synchronous>, transform_indices = @transform_3, window_bounds = array<i64: 64, 128>}, {pipeline_mode = #tpu.pipeline_mode<synchronous>, transform_indices = @transform_4, window_bounds = array<i64: 64, 1>}, {pipeline_mode = #tpu.pipeline_mode<synchronous>, transform_indices = @transform_5, window_bounds = array<i64: 1, 64>}, {pipeline_mode = #tpu.pipeline_mode<synchronous>, transform_indices = @transform_6, window_bounds = array<i64: 1, 1>}, {transform_indices = @transform_7, window_bounds = array<i64: 10>}, {pipeline_mode = #tpu.pipeline_mode<synchronous>, transform_indices = @transform_8, window_bounds = array<i64: 1, 128>}]} {
    %c0_i32 = arith.constant 0 : i32
    %0 = arith.cmpi eq, %arg0, %c0_i32 : i32
    %1 = arith.extui %0 : i1 to i32
    %c0_i32_0 = arith.constant 0 : i32
    %2 = arith.cmpi ne, %1, %c0_i32_0 : i32
    scf.if %2 {
      %cst_24 = arith.constant 0.000000e+00 : f32
      %83 = vector.broadcast %cst_24 : f32 to vector<1x128xf32>
      %c0_25 = arith.constant 0 : index
      %c0_26 = arith.constant 0 : index
      %84 = vector.load %arg9[%c0_25, %c0_26] : memref<1x128xf32, #tpu.memory_space<vmem>>, vector<1x128xf32>
      tpu.vector_store %arg9[%c0_25, %c0_26], %83 {strides = array<i32>} : memref<1x128xf32, #tpu.memory_space<vmem>>, vector<1x128xf32>,
    } else {
    }
    %c0 = arith.constant 0 : index
    %c0_1 = arith.constant 0 : index
    %3 = vector.load %arg1[%c0, %c0_1] : memref<128x128xf32, #tpu.memory_space<vmem>>, vector<128x128xf32>
    %c0_2 = arith.constant 0 : index
    %c0_3 = arith.constant 0 : index
    %4 = vector.load %arg4[%c0_2, %c0_3] : memref<64x128xf32, #tpu.memory_space<vmem>>, vector<64x128xf32>
    %c0_4 = arith.constant 0 : index
    %c0_5 = arith.constant 0 : index
    %5 = vector.load %arg5[%c0_4, %c0_5] : memref<64x1xf32, #tpu.memory_space<vmem>>, vector<64x1xf32>
    %cst = arith.constant dense<0.000000e+00> : vector<64x128xf32>
    %6 = tpu.matmul %4, %3, %cst {dimension_numbers = #tpu.dot_dimension_numbers<[1], [1], [0], [0], [0, 0, 1, 0], [], []>} : vector<64x128xf32>, vector<128x128xf32>, vector<64x128xf32> -> vector<64x128xf32>
    %7 = vector.broadcast %5 : vector<64x1xf32> to vector<64x128xf32>
    %8 = arith.addf %6, %7 : vector<64x128xf32>
    %9 = arith.negf %8 : vector<64x128xf32>
    %10 = math.exp %9 : vector<64x128xf32>
    %cst_6 = arith.constant 1.000000e+00 : f32
    %11 = vector.broadcast %cst_6 : f32 to vector<64x128xf32>
    %12 = arith.addf %11, %10 : vector<64x128xf32>
    %13 = arith.divf %11, %12 : vector<64x128xf32>
    %14 = arith.mulf %8, %13 : vector<64x128xf32>
    %c0_7 = arith.constant 0 : index
    %c0_8 = arith.constant 0 : index
    %15 = vector.load %arg6[%c0_7, %c0_8] : memref<1x64xf32, #tpu.memory_space<vmem>>, vector<1x64xf32>
    %c0_9 = arith.constant 0 : index
    %c0_10 = arith.constant 0 : index
    %16 = vector.load %arg7[%c0_9, %c0_10] : memref<1x1xf32, #tpu.memory_space<vmem>>, vector<1x1xf32>
    %cst_11 = arith.constant dense<0.000000e+00> : vector<1x128xf32>
    %17 = tpu.matmul %15, %14, %cst_11 {dimension_numbers = #tpu.dot_dimension_numbers<[1], [0], [0], [1], [0, 0, 1, 1], [], []>} : vector<1x64xf32>, vector<64x128xf32>, vector<1x128xf32> -> vector<1x128xf32>
    %18 = vector.broadcast %16 : vector<1x1xf32> to vector<1x128xf32>
    %19 = arith.addf %17, %18 : vector<1x128xf32>
    %c0_12 = arith.constant 0 : index
    %c0_13 = arith.constant 0 : index
    %20 = vector.load %arg2[%c0_12, %c0_13] : memref<1x128xi32, #tpu.memory_space<vmem>>, vector<1x128xi32>
    %cst_14 = arith.constant 0.000000e+00 : f32
    %21 = vector.broadcast %cst_14 : f32 to vector<1x128xf32>
    %c0_i32_15 = arith.constant 0 : i32
    %22 = vector.broadcast %c0_i32_15 : i32 to vector<1x128xi32>
    %23 = arith.cmpi eq, %20, %22 : vector<1x128xi32>
    %c0_16 = arith.constant 0 : index
    %24 = memref.load %arg8[%c0_16] : memref<10xf32, #tpu.memory_space<smem>>
    %25 = vector.broadcast %24 : f32 to vector<1x128xf32>
    %26 = arith.select %23, %25, %21 : vector<1x128xi1>, vector<1x128xf32>
    %c1_i32 = arith.constant 1 : i32
    %27 = vector.broadcast %c1_i32 : i32 to vector<1x128xi32>
    %28 = arith.cmpi eq, %20, %27 : vector<1x128xi32>
    %c1 = arith.constant 1 : index
    %29 = memref.load %arg8[%c1] : memref<10xf32, #tpu.memory_space<smem>>
    %30 = vector.broadcast %29 : f32 to vector<1x128xf32>
    %31 = arith.select %28, %30, %26 : vector<1x128xi1>, vector<1x128xf32>
    %c2_i32 = arith.constant 2 : i32
    %32 = vector.broadcast %c2_i32 : i32 to vector<1x128xi32>
    %33 = arith.cmpi eq, %20, %32 : vector<1x128xi32>
    %c2 = arith.constant 2 : index
    %34 = memref.load %arg8[%c2] : memref<10xf32, #tpu.memory_space<smem>>
    %35 = vector.broadcast %34 : f32 to vector<1x128xf32>
    %36 = arith.select %33, %35, %31 : vector<1x128xi1>, vector<1x128xf32>
    %c3_i32 = arith.constant 3 : i32
    %37 = vector.broadcast %c3_i32 : i32 to vector<1x128xi32>
    %38 = arith.cmpi eq, %20, %37 : vector<1x128xi32>
    %c3 = arith.constant 3 : index
    %39 = memref.load %arg8[%c3] : memref<10xf32, #tpu.memory_space<smem>>
    %40 = vector.broadcast %39 : f32 to vector<1x128xf32>
    %41 = arith.select %38, %40, %36 : vector<1x128xi1>, vector<1x128xf32>
    %c4_i32 = arith.constant 4 : i32
    %42 = vector.broadcast %c4_i32 : i32 to vector<1x128xi32>
    %43 = arith.cmpi eq, %20, %42 : vector<1x128xi32>
    %c4 = arith.constant 4 : index
    %44 = memref.load %arg8[%c4] : memref<10xf32, #tpu.memory_space<smem>>
    %45 = vector.broadcast %44 : f32 to vector<1x128xf32>
    %46 = arith.select %43, %45, %41 : vector<1x128xi1>, vector<1x128xf32>
    %c5_i32 = arith.constant 5 : i32
    %47 = vector.broadcast %c5_i32 : i32 to vector<1x128xi32>
    %48 = arith.cmpi eq, %20, %47 : vector<1x128xi32>
    %c5 = arith.constant 5 : index
    %49 = memref.load %arg8[%c5] : memref<10xf32, #tpu.memory_space<smem>>
    %50 = vector.broadcast %49 : f32 to vector<1x128xf32>
    %51 = arith.select %48, %50, %46 : vector<1x128xi1>, vector<1x128xf32>
    %c6_i32 = arith.constant 6 : i32
    %52 = vector.broadcast %c6_i32 : i32 to vector<1x128xi32>
    %53 = arith.cmpi eq, %20, %52 : vector<1x128xi32>
    %c6 = arith.constant 6 : index
    %54 = memref.load %arg8[%c6] : memref<10xf32, #tpu.memory_space<smem>>
    %55 = vector.broadcast %54 : f32 to vector<1x128xf32>
    %56 = arith.select %53, %55, %51 : vector<1x128xi1>, vector<1x128xf32>
    %c7_i32 = arith.constant 7 : i32
    %57 = vector.broadcast %c7_i32 : i32 to vector<1x128xi32>
    %58 = arith.cmpi eq, %20, %57 : vector<1x128xi32>
    %c7 = arith.constant 7 : index
    %59 = memref.load %arg8[%c7] : memref<10xf32, #tpu.memory_space<smem>>
    %60 = vector.broadcast %59 : f32 to vector<1x128xf32>
    %61 = arith.select %58, %60, %56 : vector<1x128xi1>, vector<1x128xf32>
    %c8_i32 = arith.constant 8 : i32
    %62 = vector.broadcast %c8_i32 : i32 to vector<1x128xi32>
    %63 = arith.cmpi eq, %20, %62 : vector<1x128xi32>
    %c8 = arith.constant 8 : index
    %64 = memref.load %arg8[%c8] : memref<10xf32, #tpu.memory_space<smem>>
    %65 = vector.broadcast %64 : f32 to vector<1x128xf32>
    %66 = arith.select %63, %65, %61 : vector<1x128xi1>, vector<1x128xf32>
    %c9_i32 = arith.constant 9 : i32
    %67 = vector.broadcast %c9_i32 : i32 to vector<1x128xi32>
    %68 = arith.cmpi eq, %20, %67 : vector<1x128xi32>
    %c9 = arith.constant 9 : index
    %69 = memref.load %arg8[%c9] : memref<10xf32, #tpu.memory_space<smem>>
    %70 = vector.broadcast %69 : f32 to vector<1x128xf32>
    %71 = arith.select %68, %70, %66 : vector<1x128xi1>, vector<1x128xf32>
    %72 = arith.addf %19, %71 : vector<1x128xf32>
    %c0_17 = arith.constant 0 : index
    %c0_18 = arith.constant 0 : index
    %73 = vector.load %arg3[%c0_17, %c0_18] : memref<1x128xi32, #tpu.memory_space<vmem>>, vector<1x128xi32>
    %74 = tpu.iota {dimensions = array<i32: 0>} : vector<128x128xi32>
    %75 = vector.broadcast %73 : vector<1x128xi32> to vector<128x128xi32>
    %76 = arith.cmpi eq, %74, %75 : vector<128x128xi32>
    %77 = arith.extui %76 : vector<128x128xi1> to vector<128x128xi32>
    %78 = arith.sitofp %77 : vector<128x128xi32> to vector<128x128xf32>
    %c0_19 = arith.constant 0 : index
    %c0_20 = arith.constant 0 : index
    %79 = vector.load %arg9[%c0_19, %c0_20] : memref<1x128xf32, #tpu.memory_space<vmem>>, vector<1x128xf32>
    %cst_21 = arith.constant dense<0.000000e+00> : vector<1x128xf32>
    %80 = tpu.matmul %72, %78, %cst_21 {dimension_numbers = #tpu.dot_dimension_numbers<[1], [1], [0], [0], [0, 0, 1, 0], [], []>} : vector<1x128xf32>, vector<128x128xf32>, vector<1x128xf32> -> vector<1x128xf32>
    %81 = arith.addf %79, %80 : vector<1x128xf32>
    %c0_22 = arith.constant 0 : index
    %c0_23 = arith.constant 0 : index
    %82 = vector.load %arg9[%c0_22, %c0_23] : memref<1x128xf32, #tpu.memory_space<vmem>>, vector<1x128xf32>
    tpu.vector_store %arg9[%c0_22, %c0_23], %81 {strides = array<i32>} : memref<1x128xf32, #tpu.memory_space<vmem>>, vector<1x128xf32>,
    return
  }
  func.func @transform_0(%arg0: i32) -> (i32, i32) {
    %c0_i32 = arith.constant 0 : i32
    %c0_i32_0 = arith.constant 0 : i32
    return %arg0, %c0_i32 : i32, i32
  }
  func.func @transform_1(%arg0: i32) -> (i32, i32) {
    %c0_i32 = arith.constant 0 : i32
    %c0_i32_0 = arith.constant 0 : i32
    return %c0_i32, %arg0 : i32, i32
  }
  func.func @transform_2(%arg0: i32) -> (i32, i32) {
    %c0_i32 = arith.constant 0 : i32
    %c0_i32_0 = arith.constant 0 : i32
    return %c0_i32, %arg0 : i32, i32
  }
  func.func @transform_3(%arg0: i32) -> (i32, i32) {
    %c0_i32 = arith.constant 0 : i32
    %c0_i32_0 = arith.constant 0 : i32
    %c0_i32_1 = arith.constant 0 : i32
    return %c0_i32, %c0_i32_0 : i32, i32
  }
  func.func @transform_4(%arg0: i32) -> (i32, i32) {
    %c0_i32 = arith.constant 0 : i32
    %c0_i32_0 = arith.constant 0 : i32
    %c0_i32_1 = arith.constant 0 : i32
    return %c0_i32, %c0_i32_0 : i32, i32
  }
  func.func @transform_5(%arg0: i32) -> (i32, i32) {
    %c0_i32 = arith.constant 0 : i32
    %c0_i32_0 = arith.constant 0 : i32
    %c0_i32_1 = arith.constant 0 : i32
    return %c0_i32, %c0_i32_0 : i32, i32
  }
  func.func @transform_6(%arg0: i32) -> (i32, i32) {
    %c0_i32 = arith.constant 0 : i32
    %c0_i32_0 = arith.constant 0 : i32
    %c0_i32_1 = arith.constant 0 : i32
    return %c0_i32, %c0_i32_0 : i32, i32
  }
  func.func @transform_7(%arg0: i32) -> i32 {
    %c0_i32 = arith.constant 0 : i32
    %c0_i32_0 = arith.constant 0 : i32
    return %c0_i32 : i32
  }
  func.func @transform_8(%arg0: i32) -> (i32, i32) {
    %c0_i32 = arith.constant 0 : i32
    %c0_i32_0 = arith.constant 0 : i32
    %c0_i32_1 = arith.constant 0 : i32
    return %c0_i32, %c0_i32_0 : i32, i32
  }
}

</mosaic_0001>

<llo_original>
// kernel: tpu_custom_call.1
$region0: #{tpu_custom_call.1}
  #allocation0 [shape = 'u32[]', space=smem, size = 0x4, offset = 0x4, fixed_abs, tag = 'smem constant byte address 0x4 - core index']
  #allocation1 [shape = 'u32[144,128]{1,0:T(1,128)}', space=vmem, size = 0x12000, scoped, tag = 'internal scratch']
  #allocation2 [shape = 'f32[1,1]{1,0:T(1,128)S(1)}', space=vmem, size = 0x200, scoped, tag = 'scoped memory for tpu_custom_call.1']
  %s0 = inlined_call_operand.hbm [shape: f32[384,128], index: 0, kind: input, shape index: {}]
  %s1 = inlined_call_operand.vmem [shape: s32[1,384], index: 1, kind: input, shape index: {}]
  %s2 = inlined_call_operand.vmem [shape: s32[1,384], index: 2, kind: input, shape index: {}]
  %s3 = inlined_call_operand.vmem [shape: f32[64,128], index: 3, kind: input, shape index: {}]
  %s4 = inlined_call_operand.vmem [shape: f32[64,1], index: 4, kind: input, shape index: {}]
  %s5 = inlined_call_operand.vmem [shape: f32[1,64], index: 5, kind: input, shape index: {}]
  %s6 = inlined_call_operand.<no memory space> [shape: f32[1,1], index: 6, kind: input, shape index: {}]
  %s7 = inlined_call_operand.vmem [shape: f32[10], index: 7, kind: input, shape index: {}]
  %s8 = inlined_call_operand.hbm [shape: f32[1,128], index: 8, kind: output, shape index: {}]
  %s9 = sld [smem:[#allocation0]]
  $region77: #{tpu_custom_call.1} parent=0
    _
  %s11 = ssub.s32 1, %s9
  %s12 = scalar_select 0, %s11, %s9
  %v13 = vstv %s6
  %14 = vst [vmem:[#allocation2] sm:$0x1] %v13
  $region1: #{tpu_custom_call.1} parent=0
    #allocation3 [shape = 'u8[131072]{0}', space=vmem, size = 0x20000, scoped, tag = 'input window, operand 0']
    #allocation4 [shape = 's32[2]{0}', space=sflag, size = 0x8, scoped, tag = 'scoped memory for tpu_custom_call.1']
    #allocation5 [shape = 's32[2]{0}', space=sflag, size = 0x8, scoped, tag = 'scoped memory for tpu_custom_call.1']
    #allocation6 [shape = 's32[2]{0}', space=sflag, size = 0x8, scoped, tag = 'scoped memory for tpu_custom_call.1']
    #allocation7 [shape = 'u8[512]{0}', space=smem, size = 0x200, scoped, tag = 'input window, operand 7, single buffered']
    #allocation8 [shape = 'u8[512]{0}', space=vmem, size = 0x400, scoped, tag = 'output window, operand 0, single buffered']
    %15 = vsyncpa [#allocation4], 0
    %s16 = scalar_lea.sflag [#allocation4], 1
    %17 = vsyncpa %s16, 0
    %18 = vsyncpa [#allocation6], 0
    %19 = vsyncpa [#allocation5], 0
    loop: start=0, step=1, limit=5
    $region2: #{tpu_custom_call.1} parent=1 // loop_pre_header
      _
    $region3: #{tpu_custom_call.1} parent=1 // loop_header
      %s21 = sphi 0, %s25
      %p22 = scmp.ge.s32.totalorder %s21, 5
      %s31 = sphi 0, %s33
      %s34 = sphi 0, %s31
      %s35 = sphi 0, %s34
      %s51 = sphi 0, %s35
      %s57 = sphi 0, %s59
      %s60 = sphi 0, %s57
      %s61 = sphi 0, %s60
      %s77 = sphi 0, %s61
      %s83 = sphi 0, %s85
      %s86 = sphi 0, %s83
      %s87 = sphi 0, %s86
      %s103 = sphi 0, %s87
      %s107 = sphi 0, %s107
      %s109 = sphi 0, %s107
      %s110 = sphi 0, %s109
      %s124 = sphi 0, %s110
      %s128 = sphi 0, %s128
      %s130 = sphi 0, %s128
      %s131 = sphi 0, %s130
      %s145 = sphi 0, %s131
      %s149 = sphi 0, %s149
      %s151 = sphi 0, %s149
      %s152 = sphi 0, %s151
      %s166 = sphi 0, %s152
      %s170 = sphi 0, %s170
      %s172 = sphi 0, %s170
      %s173 = sphi 0, %s172
      %s187 = sphi 0, %s173
      %s191 = sphi 0, %s191
      %s193 = sphi 0, %s191
      %s194 = sphi 0, %s193
      %s208 = sphi 0, %s194
      %s212 = sphi 0, %s212
      %s214 = sphi 0, %s212
      %s215 = sphi 0, %s214
      %s229 = sphi 0, %s215
    $region4: #{tpu_custom_call.1} parent=1 // loop_header_branch
      %24 = sbr.rel (%p22) target = $region8
    $region5: #{tpu_custom_call.1} parent=1 // loop_body
      %s26 = ssub.s32 %s21, 1
      %s27 = ssub.s32 %s21, 2
      %s28 = sadd.s32 %s21, 1
      %s29 = ssub.s32 %s21, %s28
      %p30 = scmp.eq.s32.totalorder %s29, 0
      %s32 = sadd.s32 %s31, 1
      %s33 = scalar_select %p30, %s31, %s32
      %p36 = pneg %p30
      %p37 = scmp.eq.s32.totalorder %s21, 2
      %p38 = por %p36, %p37
      %p39 = scmp.ne.s32.totalorder %s31, %s34
      %p40 = scmp.eq.s32.totalorder %s21, 0
      %p41 = por %p39, %p40
      %p42 = scmp.ne.s32.totalorder %s31, %s34
      %p43 = scmp.eq.s32.totalorder %s26, 2
      %p44 = por %p42, %p43
      %p45 = scmp.ne.s32.totalorder %s34, %s35
      %p46 = scmp.eq.s32.totalorder %s26, 0
      %p47 = por %p45, %p46
      %p48 = scmp.ne.s32.totalorder %s34, %s35
      %p49 = scmp.eq.s32.totalorder %s27, 2
      %p50 = por %p48, %p49
      %p52 = scmp.ne.s32.totalorder %s35, %s51
      %p53 = scmp.eq.s32.totalorder %s27, 0
      %p54 = por %p52, %p53
      %s55 = ssub.s32 %s21, %s28
      %p56 = scmp.eq.s32.totalorder %s55, 0
      %s58 = sadd.s32 %s57, 1
      %s59 = scalar_select %p56, %s57, %s58
      %p62 = pneg %p56
      %p63 = scmp.eq.s32.totalorder %s21, 2
      %p64 = por %p62, %p63
      %p65 = scmp.ne.s32.totalorder %s57, %s60
      %p66 = scmp.eq.s32.totalorder %s21, 0
      %p67 = por %p65, %p66
      %p68 = scmp.ne.s32.totalorder %s57, %s60
      %p69 = scmp.eq.s32.totalorder %s26, 2
      %p70 = por %p68, %p69
      %p71 = scmp.ne.s32.totalorder %s60, %s61
      %p72 = scmp.eq.s32.totalorder %s26, 0
      %p73 = por %p71, %p72
      %p74 = scmp.ne.s32.totalorder %s60, %s61
      %p75 = scmp.eq.s32.totalorder %s27, 2
      %p76 = por %p74, %p75
      %p78 = scmp.ne.s32.totalorder %s61, %s77
      %p79 = scmp.eq.s32.totalorder %s27, 0
      %p80 = por %p78, %p79
      %s81 = ssub.s32 %s21, %s28
      %p82 = scmp.eq.s32.totalorder %s81, 0
      %s84 = sadd.s32 %s83, 1
      %s85 = scalar_select %p82, %s83, %s84
      %p88 = pneg %p82
      %p89 = scmp.eq.s32.totalorder %s21, 2
      %p90 = por %p88, %p89
      %p91 = scmp.ne.s32.totalorder %s83, %s86
      %p92 = scmp.eq.s32.totalorder %s21, 0
      %p93 = por %p91, %p92
      %p94 = scmp.ne.s32.totalorder %s83, %s86
      %p95 = scmp.eq.s32.totalorder %s26, 2
      %p96 = por %p94, %p95
      %p97 = scmp.ne.s32.totalorder %s86, %s87
      %p98 = scmp.eq.s32.totalorder %s26, 0
      %p99 = por %p97, %p98
      %p100 = scmp.ne.s32.totalorder %s86, %s87
      %p101 = scmp.eq.s32.totalorder %s27, 2
      %p102 = por %p100, %p101
      %p104 = scmp.ne.s32.totalorder %s87, %s103
      %p105 = scmp.eq.s32.totalorder %s27, 0
      %p106 = por %p104, %p105
      %s108 = sadd.s32 %s107, 1
      %p111 = scmp.eq.s32.totalorder %s21, 2
      %p112 = scmp.ne.s32.totalorder %s107, %s109
      %p113 = scmp.eq.s32.totalorder %s21, 0
      %p114 = por %p112, %p113
      %p115 = scmp.ne.s32.totalorder %s107, %s109
      %p116 = scmp.eq.s32.totalorder %s26, 2
      %p117 = por %p115, %p116
      %p118 = scmp.ne.s32.totalorder %s109, %s110
      %p119 = scmp.eq.s32.totalorder %s26, 0
      %p120 = por %p118, %p119
      %p121 = scmp.ne.s32.totalorder %s109, %s110
      %p122 = scmp.eq.s32.totalorder %s27, 2
      %p123 = por %p121, %p122
      %p125 = scmp.ne.s32.totalorder %s110, %s124
      %p126 = scmp.eq.s32.totalorder %s27, 0
      %p127 = por %p125, %p126
      %s129 = sadd.s32 %s128, 1
      %p132 = scmp.eq.s32.totalorder %s21, 2
      %p133 = scmp.ne.s32.totalorder %s128, %s130
      %p134 = scmp.eq.s32.totalorder %s21, 0
      %p135 = por %p133, %p134
      %p136 = scmp.ne.s32.totalorder %s128, %s130
      %p137 = scmp.eq.s32.totalorder %s26, 2
      %p138 = por %p136, %p137
      %p139 = scmp.ne.s32.totalorder %s130, %s131
      %p140 = scmp.eq.s32.totalorder %s26, 0
      %p141 = por %p139, %p140
      %p142 = scmp.ne.s32.totalorder %s130, %s131
      %p143 = scmp.eq.s32.totalorder %s27, 2
      %p144 = por %p142, %p143
      %p146 = scmp.ne.s32.totalorder %s131, %s145
      %p147 = scmp.eq.s32.totalorder %s27, 0
      %p148 = por %p146, %p147
      %s150 = sadd.s32 %s149, 1
      %p153 = scmp.eq.s32.totalorder %s21, 2
      %p154 = scmp.ne.s32.totalorder %s149, %s151
      %p155 = scmp.eq.s32.totalorder %s21, 0
      %p156 = por %p154, %p155
      %p157 = scmp.ne.s32.totalorder %s149, %s151
      %p158 = scmp.eq.s32.totalorder %s26, 2
      %p159 = por %p157, %p158
      %p160 = scmp.ne.s32.totalorder %s151, %s152
      %p161 = scmp.eq.s32.totalorder %s26, 0
      %p162 = por %p160, %p161
      %p163 = scmp.ne.s32.totalorder %s151, %s152
      %p164 = scmp.eq.s32.totalorder %s27, 2
      %p165 = por %p163, %p164
      %p167 = scmp.ne.s32.totalorder %s152, %s166
      %p168 = scmp.eq.s32.totalorder %s27, 0
      %p169 = por %p167, %p168
      %s171 = sadd.s32 %s170, 1
      %p174 = scmp.eq.s32.totalorder %s21, 2
      %p175 = scmp.ne.s32.totalorder %s170, %s172
      %p176 = scmp.eq.s32.totalorder %s21, 0
      %p177 = por %p175, %p176
      %p178 = scmp.ne.s32.totalorder %s170, %s172
      %p179 = scmp.eq.s32.totalorder %s26, 2
      %p180 = por %p178, %p179
      %p181 = scmp.ne.s32.totalorder %s172, %s173
      %p182 = scmp.eq.s32.totalorder %s26, 0
      %p183 = por %p181, %p182
      %p184 = scmp.ne.s32.totalorder %s172, %s173
      %p185 = scmp.eq.s32.totalorder %s27, 2
      %p186 = por %p184, %p185
      %p188 = scmp.ne.s32.totalorder %s173, %s187
      %p189 = scmp.eq.s32.totalorder %s27, 0
      %p190 = por %p188, %p189
      %s192 = sadd.s32 %s191, 1
      %p195 = scmp.eq.s32.totalorder %s21, 2
      %p196 = scmp.ne.s32.totalorder %s191, %s193
      %p197 = scmp.eq.s32.totalorder %s21, 0
      %p198 = por %p196, %p197
      %p199 = scmp.ne.s32.totalorder %s191, %s193
      %p200 = scmp.eq.s32.totalorder %s26, 2
      %p201 = por %p199, %p200
      %p202 = scmp.ne.s32.totalorder %s193, %s194
      %p203 = scmp.eq.s32.totalorder %s26, 0
      %p204 = por %p202, %p203
      %p205 = scmp.ne.s32.totalorder %s193, %s194
      %p206 = scmp.eq.s32.totalorder %s27, 2
      %p207 = por %p205, %p206
      %p209 = scmp.ne.s32.totalorder %s194, %s208
      %p210 = scmp.eq.s32.totalorder %s27, 0
      %p211 = por %p209, %p210
      %s213 = sadd.s32 %s212, 1
      %p216 = scmp.eq.s32.totalorder %s21, 2
      %p217 = scmp.ne.s32.totalorder %s212, %s214
      %p218 = scmp.eq.s32.totalorder %s21, 0
      %p219 = por %p217, %p218
      %p220 = scmp.ne.s32.totalorder %s212, %s214
      %p221 = scmp.eq.s32.totalorder %s26, 2
      %p222 = por %p220, %p221
      %p223 = scmp.ne.s32.totalorder %s214, %s215
      %p224 = scmp.eq.s32.totalorder %s26, 0
      %p225 = por %p223, %p224
      %p226 = scmp.ne.s32.totalorder %s214, %s215
      %p227 = scmp.eq.s32.totalorder %s27, 2
      %p228 = por %p226, %p227
      %p230 = scmp.ne.s32.totalorder %s215, %s229
      %p231 = scmp.eq.s32.totalorder %s27, 0
      %p232 = por %p230, %p231
      %p233 = scmp.le.s32.totalorder 1, %s21
      %p234 = scmp.lt.s32.totalorder %s21, 4
      %p235 = pnand %p233, %p234
      %p236 = pneg %p235
      // Predicated region
      $region9: #{tpu_custom_call.1} parent=5 // pred_check
        _
      $region10: #{tpu_custom_call.1} parent=5 // pred_check_branch
        %238 = sbr.rel (%p235) target = $region12
      $region11: #{tpu_custom_call.1} parent=5 // pred_region
        %s239 = ssub.s32 %s21, 1
        // Predicated region
        $region13: #{tpu_custom_call.1} parent=11 // pred_check
          %p240 = pneg %p120
        $region14: #{tpu_custom_call.1} parent=11 // pred_check_branch
          %242 = sbr.rel (%p240) target = $region16
        $region15: #{tpu_custom_call.1} parent=11 // pred_region
          _
        $region16: #{tpu_custom_call.1} parent=11 // pred_fallthru
          _
        // Predicated region
        $region17: #{tpu_custom_call.1} parent=11 // pred_check
          %p243 = pneg %p141
        $region18: #{tpu_custom_call.1} parent=11 // pred_check_branch
          %245 = sbr.rel (%p243) target = $region20
        $region19: #{tpu_custom_call.1} parent=11 // pred_region
          _
        $region20: #{tpu_custom_call.1} parent=11 // pred_fallthru
          _
        // Predicated region
        $region21: #{tpu_custom_call.1} parent=11 // pred_check
          %p246 = pneg %p162
        $region22: #{tpu_custom_call.1} parent=11 // pred_check_branch
          %248 = sbr.rel (%p246) target = $region24
        $region23: #{tpu_custom_call.1} parent=11 // pred_region
          _
        $region24: #{tpu_custom_call.1} parent=11 // pred_fallthru
          _
        // Predicated region
        $region25: #{tpu_custom_call.1} parent=11 // pred_check
          %p249 = pneg %p183
        $region26: #{tpu_custom_call.1} parent=11 // pred_check_branch
          %251 = sbr.rel (%p249) target = $region28
        $region27: #{tpu_custom_call.1} parent=11 // pred_region
          _
        $region28: #{tpu_custom_call.1} parent=11 // pred_fallthru
          _
        // Predicated region
        $region29: #{tpu_custom_call.1} parent=11 // pred_check
          %p252 = pneg %p204
        $region30: #{tpu_custom_call.1} parent=11 // pred_check_branch
          %254 = sbr.rel (%p252) target = $region32
        $region31: #{tpu_custom_call.1} parent=11 // pred_region
          %s256 = ssub.s32 16, 16
          %257 = vsyncadd [#allocation6], %s256
          %s259 = sshll.u32 %s7, 4
          %s260 = int_to_ptr.vmem [resolvable:$true] %s259
          %262 = dma.vmem_to_smem %s260, 16, [#allocation7], [#allocation6]
        $region32: #{tpu_custom_call.1} parent=11 // pred_fallthru
          _
      $region12: #{tpu_custom_call.1} parent=5 // pred_fallthru
        _
      %p263 = scmp.lt.s32.totalorder %s21, 3
      // Predicated region
      $region33: #{tpu_custom_call.1} parent=5 // pred_check
        %p264 = pneg %p263
      $region34: #{tpu_custom_call.1} parent=5 // pred_check_branch
        %266 = sbr.rel (%p264) target = $region36
      $region35: #{tpu_custom_call.1} parent=5 // pred_region
        // Predicated region
        $region37: #{tpu_custom_call.1} parent=35 // pred_check
          %p267 = pneg %p41
        $region38: #{tpu_custom_call.1} parent=35 // pred_check_branch
          %269 = sbr.rel (%p267) target = $region40
        $region39: #{tpu_custom_call.1} parent=35 // pred_region
          %s270 = sand.u32 %s31, 1
          %s271 = scalar_lea.sflag [#allocation4], %s270
          %s272 = sand.u32 %s31, 1
          %s273 = smul.addr %s272, 128
          %s274 = scalar_lea.vmem [#allocation3], %s273
          %s275 = smul.u32 16, %s21
          %s277 = ssub.s32 2048, 2048
          %278 = vsyncadd %s271, %s277
          %s279 = smul.addr %s275, 128
          %s280 = scalar_lea.hbm %s0, %s279
          %s281 = sshll.u32 %s274, 4
          %s282 = int_to_ptr.vmem [resolvable:$true] %s281
          %287 = dma.hbm_to_vmem [thread:$0]  %s280, 2048, %s282, %s271, 128, 128, 8
        $region40: #{tpu_custom_call.1} parent=35 // pred_fallthru
          _
        // Predicated region
        $region41: #{tpu_custom_call.1} parent=35 // pred_check
          %p288 = pneg %p67
        $region42: #{tpu_custom_call.1} parent=35 // pred_check_branch
          %290 = sbr.rel (%p288) target = $region44
        $region43: #{tpu_custom_call.1} parent=35 // pred_region
          %p291 = scmp.lt.s32.totalorder %s21, 2
          %s292 = scalar_select %p291, %s21, 2
          %s293 = scalar_lea.vmem %s1, %s292
        $region44: #{tpu_custom_call.1} parent=35 // pred_fallthru
          _
        // Predicated region
        $region45: #{tpu_custom_call.1} parent=35 // pred_check
          %p294 = pneg %p93
        $region46: #{tpu_custom_call.1} parent=35 // pred_check_branch
          %296 = sbr.rel (%p294) target = $region48
        $region47: #{tpu_custom_call.1} parent=35 // pred_region
          %p297 = scmp.lt.s32.totalorder %s21, 2
          %s298 = scalar_select %p297, %s21, 2
          %s299 = scalar_lea.vmem %s2, %s298
        $region48: #{tpu_custom_call.1} parent=35 // pred_fallthru
          _
      $region36: #{tpu_custom_call.1} parent=5 // pred_fallthru
        _
      %p300 = scmp.le.s32.totalorder 1, %s21
      %p301 = scmp.lt.s32.totalorder %s21, 4
      %p302 = pnand %p300, %p301
      %p303 = pneg %p302
      // Predicated region
      $region49: #{tpu_custom_call.1} parent=5 // pred_check
        _
      $region50: #{tpu_custom_call.1} parent=5 // pred_check_branch
        %305 = sbr.rel (%p302) target = $region52
      $region51: #{tpu_custom_call.1} parent=5 // pred_region
        %s306 = ssub.s32 %s21, 1
        %s307 = sand.u32 %s34, 1
        %s308 = scalar_lea.sflag [#allocation4], %s307
        %s309 = sand.u32 %s34, 1
        %s310 = smul.addr %s309, 128
        %s311 = scalar_lea.vmem [#allocation3], %s310
        // Predicated region
        $region53: #{tpu_custom_call.1} parent=51 // pred_check
          %p312 = pneg %p47
        $region54: #{tpu_custom_call.1} parent=51 // pred_check_branch
          %314 = sbr.rel (%p312) target = $region56
        $region55: #{tpu_custom_call.1} parent=51 // pred_region
          %315 = dma.done %s308, 2048
        $region56: #{tpu_custom_call.1} parent=51 // pred_fallthru
          _
        // Predicated region
        $region57: #{tpu_custom_call.1} parent=51 // pred_check
          %p316 = pneg %p204
        $region58: #{tpu_custom_call.1} parent=51 // pred_check_branch
          %318 = sbr.rel (%p316) target = $region60
        $region59: #{tpu_custom_call.1} parent=51 // pred_region
          %319 = dma.done [#allocation6], 16
        $region60: #{tpu_custom_call.1} parent=51 // pred_fallthru
          _
        %320 = sfence
        %s321 = sand.u32 %s34, 1
        %s322 = scalar_lea.sflag [#allocation4], %s321
        %s323 = sand.u32 %s34, 1
        %s324 = smul.addr %s323, 128
        %s325 = scalar_lea.vmem [#allocation3], %s324
        %p326 = pneg %p47
        %p327 = pneg %p44
        %p328 = scmp.lt.s32.totalorder %s26, 2
        %s329 = scalar_select %p328, %s26, 2
        %s330 = scalar_lea.vmem %s1, %s329
        %p331 = pneg %p73
        %p332 = pneg %p70
        %p333 = scmp.lt.s32.totalorder %s26, 2
        %s334 = scalar_select %p333, %s26, 2
        %s335 = scalar_lea.vmem %s2, %s334
        %p336 = pneg %p99
        %p337 = pneg %p96
        %p338 = pneg %p120
        %p339 = pneg %p117
        %p340 = pneg %p141
        %p341 = pneg %p138
        %p342 = pneg %p162
        %p343 = pneg %p159
        %p344 = pneg %p183
        %p345 = pneg %p180
        %p346 = pneg %p204
        %p347 = pneg %p201
        %p348 = pneg %p225
        %p349 = pneg %p222
        %s350 = smul.u32 16, %s26
        %p351 = scmp.lt.s32.totalorder %s26, 2
        %s352 = scalar_select %p351, %s26, 2
        %s353 = scalar_lea.vmem %s1, %s352
        %p354 = scmp.lt.s32.totalorder %s26, 2
        %s355 = scalar_select %p354, %s26, 2
        %s356 = scalar_lea.vmem %s2, %s355
        %p357 = scmp.eq.s32.totalorder %s26, 0
        // Predicated region
        $region61: #{tpu_custom_call.1} parent=51 // pred_check
          %p358 = pneg %p357
        $region62: #{tpu_custom_call.1} parent=51 // pred_check_branch
          %360 = sbr.rel (%p358) target = $region64
        $region63: #{tpu_custom_call.1} parent=51 // pred_region
          %361 = vst [vmem:[#allocation8] sm:$0x1] 0.0
        $region64: #{tpu_custom_call.1} parent=51 // pred_fallthru
          _
        %v362 = vld [vmem:[%s311] sm:$0xff]
        %v363 = vld [vmem:[%s311 + $0x8] sm:$0xff]
        %v364 = vld [vmem:[%s311 + $0x10] sm:$0xff]
        %v365 = vld [vmem:[%s311 + $0x18] sm:$0xff]
        %v366 = vld [vmem:[%s311 + $0x20] sm:$0xff]
        %v367 = vld [vmem:[%s311 + $0x28] sm:$0xff]
        %v368 = vld [vmem:[%s311 + $0x30] sm:$0xff]
        %v369 = vld [vmem:[%s311 + $0x38] sm:$0xff]
        %v370 = vld [vmem:[%s311 + $0x40] sm:$0xff]
        %v371 = vld [vmem:[%s311 + $0x48] sm:$0xff]
        %v372 = vld [vmem:[%s311 + $0x50] sm:$0xff]
        %v373 = vld [vmem:[%s311 + $0x58] sm:$0xff]
        %v374 = vld [vmem:[%s311 + $0x60] sm:$0xff]
        %v375 = vld [vmem:[%s311 + $0x68] sm:$0xff]
        %v376 = vld [vmem:[%s311 + $0x70] sm:$0xff]
        %v377 = vld [vmem:[%s311 + $0x78] sm:$0xff]
        %v378 = vld [vmem:[%s3] sm:$0xff]
        %v379 = vld [vmem:[%s3 + $0x8] sm:$0xff]
        %v380 = vld [vmem:[%s3 + $0x10] sm:$0xff]
        %v381 = vld [vmem:[%s3 + $0x18] sm:$0xff]
        %v382 = vld [vmem:[%s3 + $0x20] sm:$0xff]
        %v383 = vld [vmem:[%s3 + $0x28] sm:$0xff]
        %v384 = vld [vmem:[%s3 + $0x30] sm:$0xff]
        %v385 = vld [vmem:[%s3 + $0x38] sm:$0xff]
        %v386 = vld [vmem:[%s4] sm:$0xff]
        %v387 = vld [vmem:[%s4 + $0x8] sm:$0xff]
        %v388 = vld [vmem:[%s4 + $0x10] sm:$0xff]
        %v389 = vld [vmem:[%s4 + $0x18] sm:$0xff]
        %v390 = vld [vmem:[%s4 + $0x20] sm:$0xff]
        %v391 = vld [vmem:[%s4 + $0x28] sm:$0xff]
        %v392 = vld [vmem:[%s4 + $0x30] sm:$0xff]
        %v393 = vld [vmem:[%s4 + $0x38] sm:$0xff]
        %395 = vset.pattern.permute.xlu0 0
        %396 = vperm.xlu0 %395, %v386
        %v397 = vpop.permute.xlu0 %396
        %400 = vset.pattern.permute.xlu0 0
        %401 = vperm.xlu0 %400, %v387
        %v402 = vpop.permute.xlu0 %401
        %405 = vset.pattern.permute.xlu0 0
        %406 = vperm.xlu0 %405, %v388
        %v407 = vpop.permute.xlu0 %406
        %410 = vset.pattern.permute.xlu0 0
        %411 = vperm.xlu0 %410, %v389
        %v412 = vpop.permute.xlu0 %411
        %415 = vset.pattern.permute.xlu0 0
        %416 = vperm.xlu0 %415, %v390
        %v417 = vpop.permute.xlu0 %416
        %420 = vset.pattern.permute.xlu0 0
        %421 = vperm.xlu0 %420, %v391
        %v422 = vpop.permute.xlu0 %421
        %425 = vset.pattern.permute.xlu0 0
        %426 = vperm.xlu0 %425, %v392
        %v427 = vpop.permute.xlu0 %426
        %430 = vset.pattern.permute.xlu0 0
        %431 = vperm.xlu0 %430, %v393
        %v432 = vpop.permute.xlu0 %431
        %434 = vmatprep.subr.mxu0 0.0
        %435 = vmatpush1.xpose.msra.mxu0 %v362
        %436 = vmatprep.subr.mxu0 0.0
        %437 = vmatpush1.xpose.msra.mxu0 %v363
        %438 = vmatprep.subr.mxu0 0.0
        %439 = vmatpush1.xpose.msra.mxu0 %v364
        %440 = vmatprep.subr.mxu0 0.0
        %441 = vmatpush1.xpose.msra.mxu0 %v365
        %442 = vmatprep.subr.mxu0 0.0
        %443 = vmatpush1.xpose.msra.mxu0 %v366
        %444 = vmatprep.subr.mxu0 0.0
        %445 = vmatpush1.xpose.msra.mxu0 %v367
        %446 = vmatprep.subr.mxu0 0.0
        %447 = vmatpush1.xpose.msra.mxu0 %v368
        %448 = vmatprep.subr.mxu0 0.0
        %449 = vmatpush1.xpose.msra.mxu0 %v369
        %450 = vmatprep.subr.mxu0 0.0
        %451 = vmatpush1.xpose.msra.mxu0 %v370
        %452 = vmatprep.subr.mxu0 0.0
        %453 = vmatpush1.xpose.msra.mxu0 %v371
        %454 = vmatprep.subr.mxu0 0.0
        %455 = vmatpush1.xpose.msra.mxu0 %v372
        %456 = vmatprep.subr.mxu0 0.0
        %457 = vmatpush1.xpose.msra.mxu0 %v373
        %458 = vmatprep.subr.mxu0 0.0
        %459 = vmatpush1.xpose.msra.mxu0 %v374
        %460 = vmatprep.subr.mxu0 0.0
        %461 = vmatpush1.xpose.msra.mxu0 %v375
        %462 = vmatprep.subr.mxu0 0.0
        %463 = vmatpush1.xpose.msra.mxu0 %v376
        %464 = vmatprep.subr.mxu0 0.0
        %465 = vmatpush1.xpose.msra.mxu0 %v377
        %466 = vmatprep.subr.mxu0 0.0
        %467 = vmatpush1.xpose.msra.mxu0 0.0
        %468 = vmatprep.subr.mxu0 0.0
        %469 = vmatpush1.xpose.msra.mxu0 0.0
        %470 = vmatprep.subr.mxu0 0.0
        %471 = vmatpush1.xpose.msra.mxu0 0.0
        %472 = vmatprep.subr.mxu0 0.0
        %473 = vmatpush1.xpose.msra.mxu0 0.0
        %474 = vmatprep.subr.mxu0 0.0
        %475 = vmatpush1.xpose.msra.mxu0 0.0
        %476 = vmatprep.subr.mxu0 0.0
        %477 = vmatpush1.xpose.msra.mxu0 0.0
        %478 = vmatprep.subr.mxu0 0.0
        %479 = vmatpush1.xpose.msra.mxu0 0.0
        %480 = vmatprep.subr.mxu0 0.0
        %481 = vmatpush1.xpose.msra.mxu0 0.0
        %482 = vmatprep.subr.mxu0 0.0
        %483 = vmatpush1.xpose.msra.mxu0 0.0
        %484 = vmatprep.subr.mxu0 0.0
        %485 = vmatpush1.xpose.msra.mxu0 0.0
        %486 = vmatprep.subr.mxu0 0.0
        %487 = vmatpush1.xpose.msra.mxu0 0.0
        %488 = vmatprep.subr.mxu0 0.0
        %489 = vmatpush1.xpose.msra.mxu0 0.0
        %490 = vmatprep.subr.mxu0 0.0
        %491 = vmatpush1.xpose.msra.mxu0 0.0
        %492 = vmatprep.subr.mxu0 0.0
        %493 = vmatpush1.xpose.msra.mxu0 0.0
        %494 = vmatprep.subr.mxu0 0.0
        %495 = vmatpush1.xpose.msra.mxu0 0.0
        %496 = vmatprep.subr.mxu0 0.0
        %497 = vmatpush1.xpose.msra.mxu0 0.0
        %498 = vmatprep.mubr.f32.mxu0 0.0
        %499 = vmatmul.mubr.f32.gmra.mrb[0].mxu0 %v378
        %v500 = vpop.f32.mrb[0].mxu0
        %v501 = vadd.f32 %v397, %v500
        %v502 = vpop.f32.mrb[0].mxu0
        %503 = vmatprep.mubr.f32.mxu0 0.0
        %504 = vmatmul.mubr.f32.gmra.mrb[0].mxu0 %v379
        %v505 = vpop.f32.mrb[0].mxu0
        %v506 = vadd.f32 %v402, %v505
        %v507 = vpop.f32.mrb[0].mxu0
        %508 = vmatprep.mubr.f32.mxu0 0.0
        %509 = vmatmul.mubr.f32.gmra.mrb[0].mxu0 %v380
        %v510 = vpop.f32.mrb[0].mxu0
        %v511 = vadd.f32 %v407, %v510
        %v512 = vpop.f32.mrb[0].mxu0
        %513 = vmatprep.mubr.f32.mxu0 0.0
        %514 = vmatmul.mubr.f32.gmra.mrb[0].mxu0 %v381
        %v515 = vpop.f32.mrb[0].mxu0
        %v516 = vadd.f32 %v412, %v515
        %v517 = vpop.f32.mrb[0].mxu0
        %518 = vmatprep.mubr.f32.mxu0 0.0
        %519 = vmatmul.mubr.f32.gmra.mrb[0].mxu0 %v382
        %v520 = vpop.f32.mrb[0].mxu0
        %v521 = vadd.f32 %v417, %v520
        %v522 = vpop.f32.mrb[0].mxu0
        %523 = vmatprep.mubr.f32.mxu0 0.0
        %524 = vmatmul.mubr.f32.gmra.mrb[0].mxu0 %v383
        %v525 = vpop.f32.mrb[0].mxu0
        %v526 = vadd.f32 %v422, %v525
        %v527 = vpop.f32.mrb[0].mxu0
        %528 = vmatprep.mubr.f32.mxu0 0.0
        %529 = vmatmul.mubr.f32.gmra.mrb[0].mxu0 %v384
        %v530 = vpop.f32.mrb[0].mxu0
        %v531 = vadd.f32 %v427, %v530
        %v532 = vpop.f32.mrb[0].mxu0
        %533 = vmatprep.mubr.f32.mxu0 0.0
        %534 = vmatmul.mubr.f32.gmra.mrb[0].mxu0 %v385
        %v535 = vpop.f32.mrb[0].mxu0
        %v536 = vadd.f32 %v432, %v535
        %v537 = vpop.f32.mrb[0].mxu0
        %538 = vdwg.mxu0
        %v539 = vxor.u32 %v501, 2147483648
        %v540 = vxor.u32 %v506, 2147483648
        %v541 = vxor.u32 %v511, 2147483648
        %v542 = vxor.u32 %v516, 2147483648
        %v543 = vxor.u32 %v521, 2147483648
        %v544 = vxor.u32 %v526, 2147483648
        %v545 = vxor.u32 %v531, 2147483648
        %v546 = vxor.u32 %v536, 2147483648
        %v547 = vmul.f32 %v539, 1.442695
        %v548 = vpow.pop %v547
        %v549 = vmul.f32 %v540, 1.442695
        %v550 = vpow.pop %v549
        %v551 = vmul.f32 %v541, 1.442695
        %v552 = vpow.pop %v551
        %v553 = vmul.f32 %v542, 1.442695
        %v554 = vpow.pop %v553
        %v555 = vmul.f32 %v543, 1.442695
        %v556 = vpow.pop %v555
        %v557 = vmul.f32 %v544, 1.442695
        %v558 = vpow.pop %v557
        %v559 = vmul.f32 %v545, 1.442695
        %v560 = vpow.pop %v559
        %v561 = vmul.f32 %v546, 1.442695
        %v562 = vpow.pop %v561
        %v563 = vadd.f32 %v548, 1.0
        %v564 = vadd.f32 %v550, 1.0
        %v565 = vadd.f32 %v552, 1.0
        %v566 = vadd.f32 %v554, 1.0
        %v567 = vadd.f32 %v556, 1.0
        %v568 = vadd.f32 %v558, 1.0
        %v569 = vadd.f32 %v560, 1.0
        %v570 = vadd.f32 %v562, 1.0
        %v571 = vrcp.pop %v563
        %v572 = vmul.f32 1.0, %v571
        %v573 = vrcp.pop %v564
        %v574 = vmul.f32 1.0, %v573
        %v575 = vrcp.pop %v565
        %v576 = vmul.f32 1.0, %v575
        %v577 = vrcp.pop %v566
        %v578 = vmul.f32 1.0, %v577
        %v579 = vrcp.pop %v567
        %v580 = vmul.f32 1.0, %v579
        %v581 = vrcp.pop %v568
        %v582 = vmul.f32 1.0, %v581
        %v583 = vrcp.pop %v569
        %v584 = vmul.f32 1.0, %v583
        %v585 = vrcp.pop %v570
        %v586 = vmul.f32 1.0, %v585
        %v587 = vmul.f32 %v501, %v572
        %v588 = vmul.f32 %v506, %v574
        %v589 = vmul.f32 %v511, %v576
        %v590 = vmul.f32 %v516, %v578
        %v591 = vmul.f32 %v521, %v580
        %v592 = vmul.f32 %v526, %v582
        %v593 = vmul.f32 %v531, %v584
        %v594 = vmul.f32 %v536, %v586
        %v595 = vld [vmem:[%s5] sm:$0x1]
        %v596 = vld [vmem:[#allocation2] sm:$0x1]
        %598 = vset.pattern.permute.xlu0 0
        %599 = vperm.xlu0 %598, %v596
        %v600 = vpop.permute.xlu0 %599
        %v602 = vlaneseq
        %v603 = vshrl.u32 %v602, 7
        %v604 = vsub.s32 0, %v603
        %v605 = vrot.slane %v600, %v604
        %vm606 = vcmask 523264
        %v608 = vsel %vm606, %v595, 0
        %610 = vmatprep.subr.mxu0 0.0
        %611 = vmatpush1.msra.mxu0 %v587
        %612 = vmatprep.subr.mxu0 0.0
        %613 = vmatpush1.msra.mxu0 %v588
        %614 = vmatprep.subr.mxu0 0.0
        %615 = vmatpush1.msra.mxu0 %v589
        %616 = vmatprep.subr.mxu0 0.0
        %617 = vmatpush1.msra.mxu0 %v590
        %618 = vmatprep.subr.mxu0 0.0
        %619 = vmatpush1.msra.mxu0 %v591
        %620 = vmatprep.subr.mxu0 0.0
        %621 = vmatpush1.msra.mxu0 %v592
        %622 = vmatprep.subr.mxu0 0.0
        %623 = vmatpush1.msra.mxu0 %v593
        %624 = vmatprep.subr.mxu0 0.0
        %625 = vmatpush1.msra.mxu0 %v594
        %626 = vmatprep.subr.mxu0 0.0
        %627 = vmatpush1.msra.mxu0 0.0
        %628 = vmatprep.subr.mxu0 0.0
        %629 = vmatpush1.msra.mxu0 0.0
        %630 = vmatprep.subr.mxu0 0.0
        %631 = vmatpush1.msra.mxu0 0.0
        %632 = vmatprep.subr.mxu0 0.0
        %633 = vmatpush1.msra.mxu0 0.0
        %634 = vmatprep.subr.mxu0 0.0
        %635 = vmatpush1.msra.mxu0 0.0
        %636 = vmatprep.subr.mxu0 0.0
        %637 = vmatpush1.msra.mxu0 0.0
        %638 = vmatprep.subr.mxu0 0.0
        %639 = vmatpush1.msra.mxu0 0.0
        %640 = vmatprep.subr.mxu0 0.0
        %641 = vmatpush1.msra.mxu0 0.0
        %642 = vmatprep.subr.mxu0 0.0
        %643 = vmatpush1.msra.mxu0 0.0
        %644 = vmatprep.subr.mxu0 0.0
        %645 = vmatpush1.msra.mxu0 0.0
        %646 = vmatprep.subr.mxu0 0.0
        %647 = vmatpush1.msra.mxu0 0.0
        %648 = vmatprep.subr.mxu0 0.0
        %649 = vmatpush1.msra.mxu0 0.0
        %650 = vmatprep.subr.mxu0 0.0
        %651 = vmatpush1.msra.mxu0 0.0
        %652 = vmatprep.subr.mxu0 0.0
        %653 = vmatpush1.msra.mxu0 0.0
        %654 = vmatprep.subr.mxu0 0.0
        %655 = vmatpush1.msra.mxu0 0.0
        %656 = vmatprep.subr.mxu0 0.0
        %657 = vmatpush1.msra.mxu0 0.0
        %658 = vmatprep.subr.mxu0 0.0
        %659 = vmatpush1.msra.mxu0 0.0
        %660 = vmatprep.subr.mxu0 0.0
        %661 = vmatpush1.msra.mxu0 0.0
        %662 = vmatprep.subr.mxu0 0.0
        %663 = vmatpush1.msra.mxu0 0.0
        %664 = vmatprep.subr.mxu0 0.0
        %665 = vmatpush1.msra.mxu0 0.0
        %666 = vmatprep.subr.mxu0 0.0
        %667 = vmatpush1.msra.mxu0 0.0
        %668 = vmatprep.subr.mxu0 0.0
        %669 = vmatpush1.msra.mxu0 0.0
        %670 = vmatprep.subr.mxu0 0.0
        %671 = vmatpush1.msra.mxu0 0.0
        %672 = vmatprep.subr.mxu0 0.0
        %673 = vmatpush1.msra.mxu0 0.0
        %674 = vmatprep.mubr.f32.mxu0 0.0
        %675 = vmatmul.mubr.f32.gmra.mrb[0].mxu0 %v608
        %v676 = vpop.f32.mrb[0].mxu0
        %v677 = vadd.f32 %v605, %v676
        %v678 = vpop.f32.mrb[0].mxu0
        %679 = vdwg.mxu0
        %v680 = vld [vmem:[%s353] sm:$0x1]
        %vm681 = vcmp.eq.s32.totalorder %v680, 0
        %s682 = sld [smem:[#allocation7]]
        %v683 = vstv %s682
        %v684 = vsel %vm681, %v683, 0.0
        %vm685 = vcmp.eq.s32.totalorder %v680, 1
        %s686 = sld [smem:[#allocation7 + $0x1]]
        %v687 = vstv %s686
        %v688 = vsel %vm685, %v687, %v684
        %vm689 = vcmp.eq.s32.totalorder %v680, 2
        %s690 = sld [smem:[#allocation7 + $0x2]]
        %v691 = vstv %s690
        %v692 = vsel %vm689, %v691, %v688
        %vm693 = vcmp.eq.s32.totalorder %v680, 3
        %s694 = sld [smem:[#allocation7 + $0x3]]
        %v695 = vstv %s694
        %v696 = vsel %vm693, %v695, %v692
        %vm697 = vcmp.eq.s32.totalorder %v680, 4
        %s698 = sld [smem:[#allocation7 + $0x4]]
        %v699 = vstv %s698
        %v700 = vsel %vm697, %v699, %v696
        %vm701 = vcmp.eq.s32.totalorder %v680, 5
        %s702 = sld [smem:[#allocation7 + $0x5]]
        %v703 = vstv %s702
        %v704 = vsel %vm701, %v703, %v700
        %vm705 = vcmp.eq.s32.totalorder %v680, 6
        %s706 = sld [smem:[#allocation7 + $0x6]]
        %v707 = vstv %s706
        %v708 = vsel %vm705, %v707, %v704
        %vm709 = vcmp.eq.s32.totalorder %v680, 7
        %s710 = sld [smem:[#allocation7 + $0x7]]
        %v711 = vstv %s710
        %v712 = vsel %vm709, %v711, %v708
        %vm713 = vcmp.eq.s32.totalorder %v680, 8
        %s714 = sld [smem:[#allocation7 + $0x8]]
        %v715 = vstv %s714
        %v716 = vsel %vm713, %v715, %v712
        %vm717 = vcmp.eq.s32.totalorder %v680, 9
        %s718 = sld [smem:[#allocation7 + $0x9]]
        %v719 = vstv %s718
        %v720 = vsel %vm717, %v719, %v716
        %v721 = vadd.f32 %v677, %v720
        %v722 = vld [vmem:[%s356] sm:$0x1]
        %v723 = vlaneseq
        %v724 = vshrl.u32 %v723, 7
        %v725 = vadd.s32 %v724, 8
        %v726 = vadd.s32 %v724, 16
        %v727 = vadd.s32 %v724, 24
        %v728 = vadd.s32 %v724, 32
        %v729 = vadd.s32 %v724, 40
        %v730 = vadd.s32 %v724, 48
        %v731 = vadd.s32 %v724, 56
        %v732 = vadd.s32 %v724, 64
        %v733 = vadd.s32 %v724, 72
        %v734 = vadd.s32 %v724, 80
        %v735 = vadd.s32 %v724, 88
        %v736 = vadd.s32 %v724, 96
        %v737 = vadd.s32 %v724, 104
        %v738 = vadd.s32 %v724, 112
        %v739 = vadd.s32 %v724, 120
        %v740 = vlaneseq
        %v741 = vshrl.u32 %v740, 7
        %v742 = vsub.s32 0, %v741
        %v743 = vrot.slane %v722, %v742
        %vm744 = vcmp.eq.s32.totalorder %v724, %v743
        %vm745 = vcmp.eq.s32.totalorder %v725, %v743
        %vm746 = vcmp.eq.s32.totalorder %v726, %v743
        %vm747 = vcmp.eq.s32.totalorder %v727, %v743
        %vm748 = vcmp.eq.s32.totalorder %v728, %v743
        %vm749 = vcmp.eq.s32.totalorder %v729, %v743
        %vm750 = vcmp.eq.s32.totalorder %v730, %v743
        %vm751 = vcmp.eq.s32.totalorder %v731, %v743
        %vm752 = vcmp.eq.s32.totalorder %v732, %v743
        %vm753 = vcmp.eq.s32.totalorder %v733, %v743
        %vm754 = vcmp.eq.s32.totalorder %v734, %v743
        %vm755 = vcmp.eq.s32.totalorder %v735, %v743
        %vm756 = vcmp.eq.s32.totalorder %v736, %v743
        %vm757 = vcmp.eq.s32.totalorder %v737, %v743
        %vm758 = vcmp.eq.s32.totalorder %v738, %v743
        %vm759 = vcmp.eq.s32.totalorder %v739, %v743
        %v760 = vsel %vm744, 1, 0
        %v761 = vsel %vm745, 1, 0
        %v762 = vsel %vm746, 1, 0
        %v763 = vsel %vm747, 1, 0
        %v764 = vsel %vm748, 1, 0
        %v765 = vsel %vm749, 1, 0
        %v766 = vsel %vm750, 1, 0
        %v767 = vsel %vm751, 1, 0
        %v768 = vsel %vm752, 1, 0
        %v769 = vsel %vm753, 1, 0
        %v770 = vsel %vm754, 1, 0
        %v771 = vsel %vm755, 1, 0
        %v772 = vsel %vm756, 1, 0
        %v773 = vsel %vm757, 1, 0
        %v774 = vsel %vm758, 1, 0
        %v775 = vsel %vm759, 1, 0
        %v776 = vcvt.s32.f32 %v760
        %v777 = vcvt.s32.f32 %v761
        %v778 = vcvt.s32.f32 %v762
        %v779 = vcvt.s32.f32 %v763
        %v780 = vcvt.s32.f32 %v764
        %v781 = vcvt.s32.f32 %v765
        %v782 = vcvt.s32.f32 %v766
        %v783 = vcvt.s32.f32 %v767
        %v784 = vcvt.s32.f32 %v768
        %v785 = vcvt.s32.f32 %v769
        %v786 = vcvt.s32.f32 %v770
        %v787 = vcvt.s32.f32 %v771
        %v788 = vcvt.s32.f32 %v772
        %v789 = vcvt.s32.f32 %v773
        %v790 = vcvt.s32.f32 %v774
        %v791 = vcvt.s32.f32 %v775
        %v792 = vld [vmem:[#allocation8] sm:$0x1]
        %793 = vmatprep.subr.mxu0 0.0
        %794 = vmatpush1.xpose.msra.mxu0 %v776
        %795 = vmatprep.subr.mxu0 0.0
        %796 = vmatpush1.xpose.msra.mxu0 %v777
        %797 = vmatprep.subr.mxu0 0.0
        %798 = vmatpush1.xpose.msra.mxu0 %v778
        %799 = vmatprep.subr.mxu0 0.0
        %800 = vmatpush1.xpose.msra.mxu0 %v779
        %801 = vmatprep.subr.mxu0 0.0
        %802 = vmatpush1.xpose.msra.mxu0 %v780
        %803 = vmatprep.subr.mxu0 0.0
        %804 = vmatpush1.xpose.msra.mxu0 %v781
        %805 = vmatprep.subr.mxu0 0.0
        %806 = vmatpush1.xpose.msra.mxu0 %v782
        %807 = vmatprep.subr.mxu0 0.0
        %808 = vmatpush1.xpose.msra.mxu0 %v783
        %809 = vmatprep.subr.mxu0 0.0
        %810 = vmatpush1.xpose.msra.mxu0 %v784
        %811 = vmatprep.subr.mxu0 0.0
        %812 = vmatpush1.xpose.msra.mxu0 %v785
        %813 = vmatprep.subr.mxu0 0.0
        %814 = vmatpush1.xpose.msra.mxu0 %v786
        %815 = vmatprep.subr.mxu0 0.0
        %816 = vmatpush1.xpose.msra.mxu0 %v787
        %817 = vmatprep.subr.mxu0 0.0
        %818 = vmatpush1.xpose.msra.mxu0 %v788
        %819 = vmatprep.subr.mxu0 0.0
        %820 = vmatpush1.xpose.msra.mxu0 %v789
        %821 = vmatprep.subr.mxu0 0.0
        %822 = vmatpush1.xpose.msra.mxu0 %v790
        %823 = vmatprep.subr.mxu0 0.0
        %824 = vmatpush1.xpose.msra.mxu0 %v791
        %825 = vmatprep.subr.mxu0 0.0
        %826 = vmatpush1.xpose.msra.mxu0 0.0
        %827 = vmatprep.subr.mxu0 0.0
        %828 = vmatpush1.xpose.msra.mxu0 0.0
        %829 = vmatprep.subr.mxu0 0.0
        %830 = vmatpush1.xpose.msra.mxu0 0.0
        %831 = vmatprep.subr.mxu0 0.0
        %832 = vmatpush1.xpose.msra.mxu0 0.0
        %833 = vmatprep.subr.mxu0 0.0
        %834 = vmatpush1.xpose.msra.mxu0 0.0
        %835 = vmatprep.subr.mxu0 0.0
        %836 = vmatpush1.xpose.msra.mxu0 0.0
        %837 = vmatprep.subr.mxu0 0.0
        %838 = vmatpush1.xpose.msra.mxu0 0.0
        %839 = vmatprep.subr.mxu0 0.0
        %840 = vmatpush1.xpose.msra.mxu0 0.0
        %841 = vmatprep.subr.mxu0 0.0
        %842 = vmatpush1.xpose.msra.mxu0 0.0
        %843 = vmatprep.subr.mxu0 0.0
        %844 = vmatpush1.xpose.msra.mxu0 0.0
        %845 = vmatprep.subr.mxu0 0.0
        %846 = vmatpush1.xpose.msra.mxu0 0.0
        %847 = vmatprep.subr.mxu0 0.0
        %848 = vmatpush1.xpose.msra.mxu0 0.0
        %849 = vmatprep.subr.mxu0 0.0
        %850 = vmatpush1.xpose.msra.mxu0 0.0
        %851 = vmatprep.subr.mxu0 0.0
        %852 = vmatpush1.xpose.msra.mxu0 0.0
        %853 = vmatprep.subr.mxu0 0.0
        %854 = vmatpush1.xpose.msra.mxu0 0.0
        %855 = vmatprep.subr.mxu0 0.0
        %856 = vmatpush1.xpose.msra.mxu0 0.0
        %857 = vmatprep.mubr.f32.mxu0 0.0
        %858 = vmatmul.mubr.f32.gmra.mrb[0].mxu0 %v721
        %v859 = vpop.f32.mrb[0].mxu0
        %v860 = vadd.f32 0.0, %v859
        %v861 = vpop.f32.mrb[0].mxu0
        %862 = vdwg.mxu0
        %v863 = vadd.f32 %v792, %v860
        %864 = vst [vmem:[#allocation8] sm:$0x1] %v863
        // Predicated region
        $region65: #{tpu_custom_call.1} parent=51 // pred_check
          %p865 = pneg %p222
        $region66: #{tpu_custom_call.1} parent=51 // pred_check_branch
          %867 = sbr.rel (%p865) target = $region68
        $region67: #{tpu_custom_call.1} parent=51 // pred_region
          %s869 = ssub.s32 16, 16
          %870 = vsyncadd [#allocation5], %s869
          %s872 = sshll.u32 [#allocation8], 4
          %s873 = int_to_ptr.vmem [resolvable:$true] %s872
          %875 = dma.vmem_to_hbm [thread:$0]  %s873, 16, %s8, [#allocation5]
        $region68: #{tpu_custom_call.1} parent=51 // pred_fallthru
          _
        // Predicated region
        $region69: #{tpu_custom_call.1} parent=51 // pred_check
          %p876 = pneg %p222
        $region70: #{tpu_custom_call.1} parent=51 // pred_check_branch
          %878 = sbr.rel (%p876) target = $region72
        $region71: #{tpu_custom_call.1} parent=51 // pred_region
          %879 = dma.done [#allocation5], 16
        $region72: #{tpu_custom_call.1} parent=51 // pred_fallthru
          _
      $region52: #{tpu_custom_call.1} parent=5 // pred_fallthru
        _
      %p880 = scmp.le.s32.totalorder 2, %s21
      // Predicated region
      $region73: #{tpu_custom_call.1} parent=5 // pred_check
        %p881 = pneg %p880
      $region74: #{tpu_custom_call.1} parent=5 // pred_check_branch
        %883 = sbr.rel (%p881) target = $region76
      $region75: #{tpu_custom_call.1} parent=5 // pred_region
        %s884 = ssub.s32 %s21, 2
      $region76: #{tpu_custom_call.1} parent=5 // pred_fallthru
        _
    $region6: #{tpu_custom_call.1} parent=1 // loop_footer
      %s25 = sadd.s32 1, %s21
    $region7: #{tpu_custom_call.1} parent=1 // loop_footer_branch
      %20 = sbr.rel target = $region3
    $region8: #{tpu_custom_call.1} parent=1 // loop_exit
      _
    %885 = vsyncpa [#allocation4], 1
    %s886 = scalar_lea.sflag [#allocation4], 1
    %887 = vsyncpa %s886, 1
    %888 = vsyncpa [#allocation5], 1
    %s889 = scalar_lea.sflag [#allocation5], 1
    %890 = vsyncpa %s889, 1
    %891 = vsyncpa [#allocation6], 1
    %s892 = scalar_lea.sflag [#allocation6], 1
    %893 = vsyncpa %s892, 1

</llo_original>
